<compile_context>
chip_gen: v6e
topology: v6e:2x2x1
jax: 0.10.0
libtpu: 0.0.40
codegen_flags: <defaults>
</compile_context>

<pallas_src>
import jax
import jax.numpy as jnp
from jax.experimental import pallas as pl
from jax.experimental.pallas import tpu as pltpu


def _ca_kernel(x_ref, gamma_ref, o_ref, gram_ref, attn_ref):
    # x_ref:     (Bt, C, tk)  VMEM chunk of the flattened input (input dtype)
    # gamma_ref: (1, 1)       SMEM scalar parameter
    # o_ref:     (Bt, C, tk)  VMEM output chunk
    # gram_ref:  (Bt, C, C)   f32 Gram accumulator (persists across grid steps)
    # attn_ref:  (Bt, C, C)   gamma-folded attention weights (input dtype)
    phase = pl.program_id(1)
    k = pl.program_id(2)
    nk = pl.num_programs(2)

    @pl.when((phase == 0) & (k == 0))
    def _():
        gram_ref[...] = jnp.zeros_like(gram_ref)

    @pl.when(phase == 0)
    def _():
        xc = x_ref[...]                           # input dtype, no f32 copy
        # Contraction on the last dim of BOTH operands -> no XLU transpose;
        # MXU feeds in input dtype, f32 accumulation.
        gram_ref[...] += jnp.einsum(
            "bck,bdk->bcd", xc, xc, preferred_element_type=jnp.float32)

    @pl.when((phase == 0) & (k == nk - 1))
    def _():
        energy = gram_ref[...]                    # (Bt, C, C) f32
        # softmax(rowmax(E) - E) == exp(rowmin(E) - E) / sum (shift-invariant,
        # exponent <= 0 so numerically stable).
        z = jnp.exp(jnp.min(energy, axis=-1, keepdims=True) - energy)
        denom = jnp.sum(z, axis=-1, keepdims=True)
        # Reciprocal-multiply instead of VPU divide; fold gamma into the CxC
        # normalization so there is no CxHW epilogue multiply.
        scale = gamma_ref[0, 0] * pl.reciprocal(denom, approx=False)
        attn_ref[...] = (z * scale).astype(attn_ref.dtype)

    @pl.when(phase == 1)
    def _():
        xc = x_ref[...]
        out = jnp.einsum("bcd,bdk->bck", attn_ref[...], xc,
                         preferred_element_type=jnp.float32)
        o_ref[...] = (out + xc.astype(jnp.float32)).astype(o_ref.dtype)


def _pick_hw_chunk(hw, max_chunk=1024):
    """Largest lane-dense chunk (multiple of 128) dividing hw, capped at max_chunk."""
    if hw <= max_chunk:
        return hw
    for c in (1024, 512, 256, 128):
        if c <= max_chunk and hw % c == 0:
            return c
    return hw  # non-multiple-of-128 spatial sizes: single full-width chunk


def _pick_batch_block(b, c):
    """Block several batch elements per grid step when C is small (fills sublanes,
    amortizes per-grid-step overhead); 1 once C >= 128."""
    if c >= 128:
        return 1
    cap = min(b, max(1, 256 // max(c, 1)))
    bt = 1
    for d in range(1, cap + 1):
        if b % d == 0:
            bt = d
    return bt


def ca_pallas(x_nchw, gamma, *, hw_chunk=None):
    """out = gamma * (softmax(rowmax(XX^T) - XX^T) @ X) + x, with X = x.view(B,C,H*W)."""
    B, C, H, W = x_nchw.shape
    HW = H * W
    x_flat = x_nchw.reshape(B, C, HW)             # pure reshape, no HBM transpose
    gamma2d = jnp.asarray(gamma, jnp.float32).reshape(1, 1)

    tk = _pick_hw_chunk(HW) if hw_chunk is None else hw_chunk
    if HW % tk != 0 or (tk != HW and tk % 128 != 0):
        tk = HW                                   # fall back to one full-width chunk
    nk = HW // tk
    bt = _pick_batch_block(B, C)
    grid = (B // bt, 2, nk)                       # (batch blocks, phase, hw chunks)

    flops = B * (4 * C * C * HW + 8 * C * C + 2 * C * HW)
    cost = pl.CostEstimate(
        flops=int(flops),
        transcendentals=int(B * C * C),
        # X is streamed twice (Gram pass + output pass), output written once.
        bytes_accessed=int(3 * B * C * HW * x_nchw.dtype.itemsize + 4),
    )

    out_flat = pl.pallas_call(
        _ca_kernel,
        out_shape=jax.ShapeDtypeStruct((B, C, HW), x_nchw.dtype),
        grid=grid,
        in_specs=[
            pl.BlockSpec((bt, C, tk), lambda b, p, k: (b, 0, k)),
            pl.BlockSpec(memory_space=pltpu.MemorySpace.SMEM),
        ],
        # Phase 0 parks the (unwritten) output buffer on chunk 0; chunks are
        # written and flushed lane-dense during phase 1 only.
        out_specs=pl.BlockSpec((bt, C, tk), lambda b, p, k: (b, 0, p * k)),
        scratch_shapes=[
            pltpu.VMEM((bt, C, C), jnp.float32),     # Gram accumulator
            pltpu.VMEM((bt, C, C), x_nchw.dtype),    # gamma-folded attention
        ],
        compiler_params=pltpu.CompilerParams(
            dimension_semantics=("parallel", "arbitrary", "arbitrary")),
        cost_estimate=cost,
    )(x_flat, gamma2d)

    return out_flat.reshape(B, C, H, W)


def _ca_reference(x, gamma):
    """Pure-JAX reference mirroring the PyTorch forward (f32, highest precision)."""
    B, C, H, W = x.shape
    X = x.reshape(B, C, H * W).astype(jnp.float32)
    energy = jnp.einsum("bck,bdk->bcd", X, X, precision="highest")
    energy_new = jnp.max(energy, axis=-1, keepdims=True) - energy
    attention = jax.nn.softmax(energy_new, axis=-1)
    out = jnp.einsum("bcd,bdk->bck", attention, X, precision="highest")
    out = jnp.asarray(gamma, jnp.float32).reshape(1, 1, 1) * out + X
    return out.reshape(B, C, H, W).astype(x.dtype)


if __name__ == "__main__":
    B, C, H, W = 2, 4, 16, 16
    key = jax.random.PRNGKey(0)
    k_x, k_g = jax.random.split(key, 2)

    # Scale keeps the softmax non-degenerate (energies O(10), not O(100)).
    x = 0.25 * jax.random.normal(k_x, (B, C, H, W), dtype=jnp.float32)
    # nn.Parameter(torch.zeros(1)) initializes gamma to 0; use a nonzero value
    # here so the attention branch actually contributes to the output.
    gamma = 0.5 + 0.1 * jax.random.normal(k_g, (1,), dtype=jnp.float32)

    # hw_chunk=128 -> 2 HW chunks, exercising the tiled Gram-accumulation path.
    out = ca_pallas(x, gamma, hw_chunk=128)
    out = jax.block_until_ready(out)

    assert out.shape == (B, C, H, W), out.shape
    assert bool(jnp.all(jnp.isfinite(out)))

    ref = _ca_reference(x, gamma)
    max_err = float(jnp.max(jnp.abs(out - ref)))
    assert jnp.allclose(out, ref, atol=1e-3, rtol=1e-3), max_err

    print("KERNEL_OK")
</pallas_src>

<mosaic_0001>
module attributes {stable_mosaic.version = 11 : i64} {
  func.func @_ca_kernel(%arg0: i32, %arg1: i32, %arg2: i32, %arg3: memref<2x4x128xf32, #tpu.memory_space<vmem>>, %arg4: memref<1x1xf32, #tpu.memory_space<smem>>, %arg5: memref<2x4x128xf32, #tpu.memory_space<vmem>>, %arg6: memref<2x4x4xf32, #tpu.memory_space<vmem>>, %arg7: memref<2x4x4xf32, #tpu.memory_space<vmem>>) attributes {dimension_semantics = [#tpu.dimension_semantics<parallel>, #tpu.dimension_semantics<arbitrary>, #tpu.dimension_semantics<arbitrary>], iteration_bounds = array<i64: 1, 2, 2>, scalar_prefetch = 0 : i64, scratch_operands = 2 : i64, tpu.core_type = #tpu.core_type<tc>, window_params = [{transform_indices = @transform_0, window_bounds = array<i64: 2, 4, 128>}, {transform_indices = @transform_1, window_bounds = array<i64: 1, 1>}, {transform_indices = @transform_2, window_bounds = array<i64: 2, 4, 128>}]} {
    %c0_i32 = arith.constant 0 : i32
    %0 = arith.cmpi eq, %arg1, %c0_i32 : i32
    %c0_i32_0 = arith.constant 0 : i32
    %1 = arith.cmpi eq, %arg2, %c0_i32_0 : i32
    %2 = arith.andi %0, %1 : i1
    %3 = arith.extui %2 : i1 to i32
    %c0_i32_1 = arith.constant 0 : i32
    %4 = arith.cmpi ne, %3, %c0_i32_1 : i32
    scf.if %4 {
      %cst = arith.constant 0.000000e+00 : f32
      %16 = vector.broadcast %cst : f32 to vector<2x4x4xf32>
      %c0 = arith.constant 0 : index
      %c0_8 = arith.constant 0 : index
      %c0_9 = arith.constant 0 : index
      %17 = vector.load %arg6[%c0, %c0_8, %c0_9] : memref<2x4x4xf32, #tpu.memory_space<vmem>>, vector<2x4x4xf32>
      tpu.vector_store %arg6[%c0, %c0_8, %c0_9], %16 {strides = array<i32>} : memref<2x4x4xf32, #tpu.memory_space<vmem>>, vector<2x4x4xf32>,
    } else {
    }
    %c0_i32_2 = arith.constant 0 : i32
    %5 = arith.cmpi eq, %arg1, %c0_i32_2 : i32
    %6 = arith.extui %5 : i1 to i32
    %c0_i32_3 = arith.constant 0 : i32
    %7 = arith.cmpi ne, %6, %c0_i32_3 : i32
    scf.if %7 {
      %c0 = arith.constant 0 : index
      %c0_8 = arith.constant 0 : index
      %c0_9 = arith.constant 0 : index
      %16 = vector.load %arg3[%c0, %c0_8, %c0_9] : memref<2x4x128xf32, #tpu.memory_space<vmem>>, vector<2x4x128xf32>
      %c0_10 = arith.constant 0 : index
      %c0_11 = arith.constant 0 : index
      %c0_12 = arith.constant 0 : index
      %17 = vector.load %arg6[%c0_10, %c0_11, %c0_12] : memref<2x4x4xf32, #tpu.memory_space<vmem>>, vector<2x4x4xf32>
      "tpu.trace_start"() <{level = 10 : i32, message = "bck,bdk->bcd"}> : () -> ()
      %cst = arith.constant dense<0.000000e+00> : vector<2x4x4xf32>
      %18 = tpu.matmul %16, %16, %cst {dimension_numbers = #tpu.dot_dimension_numbers<[2], [2], [1], [1], [0, 0, 0, 1, 1, 1], [0], [0]>} : vector<2x4x128xf32>, vector<2x4x128xf32>, vector<2x4x4xf32> -> vector<2x4x4xf32>
      "tpu.trace_stop"() : () -> ()
      %19 = arith.addf %17, %18 : vector<2x4x4xf32>
      %c0_13 = arith.constant 0 : index
      %c0_14 = arith.constant 0 : index
      %c0_15 = arith.constant 0 : index
      %20 = vector.load %arg6[%c0_13, %c0_14, %c0_15] : memref<2x4x4xf32, #tpu.memory_space<vmem>>, vector<2x4x4xf32>
      tpu.vector_store %arg6[%c0_13, %c0_14, %c0_15], %19 {strides = array<i32>} : memref<2x4x4xf32, #tpu.memory_space<vmem>>, vector<2x4x4xf32>,
    } else {
    }
    %c0_i32_4 = arith.constant 0 : i32
    %8 = arith.cmpi eq, %arg1, %c0_i32_4 : i32
    %c1_i32 = arith.constant 1 : i32
    %9 = arith.cmpi eq, %arg2, %c1_i32 : i32
    %10 = arith.andi %8, %9 : i1
    %11 = arith.extui %10 : i1 to i32
    %c0_i32_5 = arith.constant 0 : i32
    %12 = arith.cmpi ne, %11, %c0_i32_5 : i32
    scf.if %12 {
      %c0 = arith.constant 0 : index
      %c0_8 = arith.constant 0 : index
      %c0_9 = arith.constant 0 : index
      %16 = vector.load %arg6[%c0, %c0_8, %c0_9] : memref<2x4x4xf32, #tpu.memory_space<vmem>>, vector<2x4x4xf32>
      %cst = arith.constant dense<0x7F800000> : vector<2x4xf32>
      %17 = vector.multi_reduction <minimumf>, %16, %cst [2] : vector<2x4x4xf32> to vector<2x4xf32>
      %18 = vector.shape_cast %17 : vector<2x4xf32> to vector<2x4x1xf32>
      %19 = vector.broadcast %18 : vector<2x4x1xf32> to vector<2x4x4xf32>
      %20 = arith.subf %19, %16 : vector<2x4x4xf32>
      %21 = math.exp %20 : vector<2x4x4xf32>
      %cst_10 = arith.constant dense<0.000000e+00> : vector<2x4xf32>
      %22 = vector.multi_reduction <add>, %21, %cst_10 [2] : vector<2x4x4xf32> to vector<2x4xf32>
      %23 = vector.shape_cast %22 : vector<2x4xf32> to vector<2x4x1xf32>
      %c0_11 = arith.constant 0 : index
      %c0_12 = arith.constant 0 : index
      %24 = memref.load %arg4[%c0_11, %c0_12] : memref<1x1xf32, #tpu.memory_space<smem>>
      %25 = tpu.reciprocal %23 : vector<2x4x1xf32> -> vector<2x4x1xf32>
      %26 = vector.broadcast %24 : f32 to vector<2x4x1xf32>
      %27 = arith.mulf %26, %25 : vector<2x4x1xf32>
      %28 = vector.broadcast %27 : vector<2x4x1xf32> to vector<2x4x4xf32>
      %29 = arith.mulf %21, %28 : vector<2x4x4xf32>
      %c0_13 = arith.constant 0 : index
      %c0_14 = arith.constant 0 : index
      %c0_15 = arith.constant 0 : index
      %30 = vector.load %arg7[%c0_13, %c0_14, %c0_15] : memref<2x4x4xf32, #tpu.memory_space<vmem>>, vector<2x4x4xf32>
      tpu.vector_store %arg7[%c0_13, %c0_14, %c0_15], %29 {strides = array<i32>} : memref<2x4x4xf32, #tpu.memory_space<vmem>>, vector<2x4x4xf32>,
    } else {
    }
    %c1_i32_6 = arith.constant 1 : i32
    %13 = arith.cmpi eq, %arg1, %c1_i32_6 : i32
    %14 = arith.extui %13 : i1 to i32
    %c0_i32_7 = arith.constant 0 : i32
    %15 = arith.cmpi ne, %14, %c0_i32_7 : i32
    scf.if %15 {
      %c0 = arith.constant 0 : index
      %c0_8 = arith.constant 0 : index
      %c0_9 = arith.constant 0 : index
      %16 = vector.load %arg3[%c0, %c0_8, %c0_9] : memref<2x4x128xf32, #tpu.memory_space<vmem>>, vector<2x4x128xf32>
      %c0_10 = arith.constant 0 : index
      %c0_11 = arith.constant 0 : index
      %c0_12 = arith.constant 0 : index
      %17 = vector.load %arg7[%c0_10, %c0_11, %c0_12] : memref<2x4x4xf32, #tpu.memory_space<vmem>>, vector<2x4x4xf32>
      "tpu.trace_start"() <{level = 10 : i32, message = "bcd,bdk->bck"}> : () -> ()
      %cst = arith.constant dense<0.000000e+00> : vector<2x4x128xf32>
      %18 = tpu.matmul %17, %16, %cst {dimension_numbers = #tpu.dot_dimension_numbers<[2], [1], [1], [2], [0, 0, 0, 1, 1, 2], [0], [0]>} : vector<2x4x4xf32>, vector<2x4x128xf32>, vector<2x4x128xf32> -> vector<2x4x128xf32>
      "tpu.trace_stop"() : () -> ()
      %19 = arith.addf %18, %16 : vector<2x4x128xf32>
      %c0_13 = arith.constant 0 : index
      %c0_14 = arith.constant 0 : index
      %c0_15 = arith.constant 0 : index
      %20 = vector.load %arg5[%c0_13, %c0_14, %c0_15] : memref<2x4x128xf32, #tpu.memory_space<vmem>>, vector<2x4x128xf32>
      tpu.vector_store %arg5[%c0_13, %c0_14, %c0_15], %19 {strides = array<i32>} : memref<2x4x128xf32, #tpu.memory_space<vmem>>, vector<2x4x128xf32>,
    } else {
    }
    return
  }
  func.func @transform_0(%arg0: i32, %arg1: i32, %arg2: i32) -> (i32, i32, i32) {
    %c0_i32 = arith.constant 0 : i32
    %c0_i32_0 = arith.constant 0 : i32
    return %arg0, %c0_i32, %arg2 : i32, i32, i32
  }
  func.func @transform_1(%arg0: i32, %arg1: i32, %arg2: i32) -> (i32, i32) {
    %c0_i32 = arith.constant 0 : i32
    %c0_i32_0 = arith.constant 0 : i32
    %c0_i32_1 = arith.constant 0 : i32
    return %c0_i32, %c0_i32_0 : i32, i32
  }
  func.func @transform_2(%arg0: i32, %arg1: i32, %arg2: i32) -> (i32, i32, i32) {
    %0 = arith.muli %arg1, %arg2 : i32
    %c0_i32 = arith.constant 0 : i32
    %c0_i32_0 = arith.constant 0 : i32
    return %arg0, %c0_i32, %0 : i32, i32, i32
  }
}

</mosaic_0001>

<llo_original>
// kernel: tpu_custom_call.1
$region0: #{tpu_custom_call.1}
  #allocation0 [shape = 'u32[]', space=smem, size = 0x4, offset = 0x4, fixed_abs, tag = 'smem constant byte address 0x4 - core index']
  #allocation1 [shape = 'u32[144,128]{1,0:T(1,128)}', space=vmem, size = 0x12000, scoped, tag = 'internal scratch']
  #allocation2 [shape = 'f32[2,4,4]{2,1,0:T(4,128)}', space=vmem, size = 0x1000, scoped, tag = 'scratch operand']
  #allocation3 [shape = 'f32[2,4,4]{2,1,0:T(4,128)}', space=vmem, size = 0x1000, scoped, tag = 'scratch operand']
  #allocation4 [shape = 'f32[1,1]{1,0:T(1,128)S(6)}', space=smem, size = 0x200, scoped, tag = 'scoped memory for tpu_custom_call.1']
  %s0 = inlined_call_operand.hbm [shape: f32[2,4,256], index: 0, kind: input, shape index: {}]
  %s1 = inlined_call_operand.<no memory space> [shape: f32[1,1], index: 1, kind: input, shape index: {}]
  %s2 = inlined_call_operand.hbm [shape: f32[2,4,256], index: 2, kind: output, shape index: {}]
  %s3 = sld [smem:[#allocation0]]
  $region61: #{tpu_custom_call.1} parent=0
    _
  %s5 = ssub.s32 1, %s3
  %s6 = scalar_select 0, %s5, %s3
  %7 = sst [smem:[#allocation4]] %s1
  $region1: #{tpu_custom_call.1} parent=0
    #allocation5 [shape = 'u8[8192]{0}', space=vmem, size = 0x2000, scoped, tag = 'input window, operand 0']
    #allocation6 [shape = 's32[2]{0}', space=sflag, size = 0x8, scoped, tag = 'scoped memory for tpu_custom_call.1']
    #allocation7 [shape = 's32[2]{0}', space=sflag, size = 0x8, scoped, tag = 'scoped memory for tpu_custom_call.1']
    #allocation8 [shape = 'u8[8192]{0}', space=vmem, size = 0x2000, scoped, tag = 'output window, operand 0']
    %8 = vsyncpa [#allocation6], 0
    %s9 = scalar_lea.sflag [#allocation6], 1
    %10 = vsyncpa %s9, 0
    %11 = vsyncpa [#allocation7], 0
    %s12 = scalar_lea.sflag [#allocation7], 1
    %13 = vsyncpa %s12, 0
    loop: start=0, step=1, limit=6
    $region2: #{tpu_custom_call.1} parent=1 // loop_pre_header
      _
    $region3: #{tpu_custom_call.1} parent=1 // loop_header
      %s15 = sphi 0, %s19
      %p16 = scmp.ge.s32.totalorder %s15, 6
      %s22 = sphi 0, %s41
      %s23 = sphi 0, %s37
      %s24 = sphi 0, %s33
      %s25 = sphi 0, %s22
      %s26 = sphi 0, %s23
      %s27 = sphi 0, %s24
      %s28 = sphi 0, %s25
      %s29 = sphi 0, %s26
      %s30 = sphi 0, %s27
      %s46 = sphi 0, %s48
      %s49 = sphi 0, %s46
      %s50 = sphi 0, %s49
      %s66 = sphi 0, %s50
      %s70 = sphi 0, %s70
      %s72 = sphi 0, %s70
      %s73 = sphi 0, %s72
      %s87 = sphi 0, %s73
      %s97 = sphi 0, %s99
      %s100 = sphi 0, %s97
      %s101 = sphi 0, %s100
      %s117 = sphi 0, %s101
    $region4: #{tpu_custom_call.1} parent=1 // loop_header_branch
      %18 = sbr.rel (%p16) target = $region8
    $region5: #{tpu_custom_call.1} parent=1 // loop_body
      %s20 = ssub.s32 %s15, 1
      %s21 = ssub.s32 %s15, 2
      %s31 = sadd.s32 1, %s24
      %p32 = scmp.ge.s32.totalorder %s31, 2
      %s33 = scalar_select %p32, 0, %s31
      %s34 = sadd.s32 1, %s23
      %s35 = scalar_select %p32, %s34, %s23
      %p36 = scmp.ge.s32.totalorder %s35, 2
      %s37 = scalar_select %p36, 0, %s35
      %s38 = sadd.s32 1, %s22
      %s39 = scalar_select %p36, %s38, %s22
      %p40 = scmp.ge.s32.totalorder %s39, 1
      %s41 = scalar_select %p40, 0, %s39
      %s42 = ssub.s32 %s22, %s41
      %s43 = ssub.s32 %s24, %s33
      %s44 = sor.u32 %s42, %s43
      %p45 = scmp.eq.s32.totalorder %s44, 0
      %s47 = sadd.s32 %s46, 1
      %s48 = scalar_select %p45, %s46, %s47
      %p51 = pneg %p45
      %p52 = scmp.eq.s32.totalorder %s15, 3
      %p53 = por %p51, %p52
      %p54 = scmp.ne.s32.totalorder %s46, %s49
      %p55 = scmp.eq.s32.totalorder %s15, 0
      %p56 = por %p54, %p55
      %p57 = scmp.ne.s32.totalorder %s46, %s49
      %p58 = scmp.eq.s32.totalorder %s20, 3
      %p59 = por %p57, %p58
      %p60 = scmp.ne.s32.totalorder %s49, %s50
      %p61 = scmp.eq.s32.totalorder %s20, 0
      %p62 = por %p60, %p61
      %p63 = scmp.ne.s32.totalorder %s49, %s50
      %p64 = scmp.eq.s32.totalorder %s21, 3
      %p65 = por %p63, %p64
      %p67 = scmp.ne.s32.totalorder %s50, %s66
      %p68 = scmp.eq.s32.totalorder %s21, 0
      %p69 = por %p67, %p68
      %s71 = sadd.s32 %s70, 1
      %p74 = scmp.eq.s32.totalorder %s15, 3
      %p75 = scmp.ne.s32.totalorder %s70, %s72
      %p76 = scmp.eq.s32.totalorder %s15, 0
      %p77 = por %p75, %p76
      %p78 = scmp.ne.s32.totalorder %s70, %s72
      %p79 = scmp.eq.s32.totalorder %s20, 3
      %p80 = por %p78, %p79
      %p81 = scmp.ne.s32.totalorder %s72, %s73
      %p82 = scmp.eq.s32.totalorder %s20, 0
      %p83 = por %p81, %p82
      %p84 = scmp.ne.s32.totalorder %s72, %s73
      %p85 = scmp.eq.s32.totalorder %s21, 3
      %p86 = por %p84, %p85
      %p88 = scmp.ne.s32.totalorder %s73, %s87
      %p89 = scmp.eq.s32.totalorder %s21, 0
      %p90 = por %p88, %p89
      %s91 = smul.u32 %s23, %s24
      %s92 = smul.u32 %s37, %s33
      %s93 = ssub.s32 %s22, %s41
      %s94 = ssub.s32 %s91, %s92
      %s95 = sor.u32 %s93, %s94
      %p96 = scmp.eq.s32.totalorder %s95, 0
      %s98 = sadd.s32 %s97, 1
      %s99 = scalar_select %p96, %s97, %s98
      %p102 = pneg %p96
      %p103 = scmp.eq.s32.totalorder %s15, 3
      %p104 = por %p102, %p103
      %p105 = scmp.ne.s32.totalorder %s97, %s100
      %p106 = scmp.eq.s32.totalorder %s15, 0
      %p107 = por %p105, %p106
      %p108 = scmp.ne.s32.totalorder %s97, %s100
      %p109 = scmp.eq.s32.totalorder %s20, 3
      %p110 = por %p108, %p109
      %p111 = scmp.ne.s32.totalorder %s100, %s101
      %p112 = scmp.eq.s32.totalorder %s20, 0
      %p113 = por %p111, %p112
      %p114 = scmp.ne.s32.totalorder %s100, %s101
      %p115 = scmp.eq.s32.totalorder %s21, 3
      %p116 = por %p114, %p115
      %p118 = scmp.ne.s32.totalorder %s101, %s117
      %p119 = scmp.eq.s32.totalorder %s21, 0
      %p120 = por %p118, %p119
      %p121 = scmp.le.s32.totalorder 1, %s15
      %p122 = scmp.lt.s32.totalorder %s15, 5
      %p123 = pnand %p121, %p122
      %p124 = pneg %p123
      // Predicated region
      $region9: #{tpu_custom_call.1} parent=5 // pred_check
        _
      $region10: #{tpu_custom_call.1} parent=5 // pred_check_branch
        %126 = sbr.rel (%p123) target = $region12
      $region11: #{tpu_custom_call.1} parent=5 // pred_region
        %s127 = ssub.s32 %s15, 1
        // Predicated region
        $region13: #{tpu_custom_call.1} parent=11 // pred_check
          %p128 = pneg %p83
        $region14: #{tpu_custom_call.1} parent=11 // pred_check_branch
          %130 = sbr.rel (%p128) target = $region16
        $region15: #{tpu_custom_call.1} parent=11 // pred_region
          _
        $region16: #{tpu_custom_call.1} parent=11 // pred_fallthru
          _
      $region12: #{tpu_custom_call.1} parent=5 // pred_fallthru
        _
      %p131 = scmp.lt.s32.totalorder %s15, 4
      // Predicated region
      $region17: #{tpu_custom_call.1} parent=5 // pred_check
        %p132 = pneg %p131
      $region18: #{tpu_custom_call.1} parent=5 // pred_check_branch
        %134 = sbr.rel (%p132) target = $region20
      $region19: #{tpu_custom_call.1} parent=5 // pred_region
        // Predicated region
        $region21: #{tpu_custom_call.1} parent=19 // pred_check
          %p135 = pneg %p56
        $region22: #{tpu_custom_call.1} parent=19 // pred_check_branch
          %137 = sbr.rel (%p135) target = $region24
        $region23: #{tpu_custom_call.1} parent=19 // pred_region
          %s138 = sand.u32 %s46, 1
          %s139 = scalar_lea.sflag [#allocation6], %s138
          %s140 = sand.u32 %s46, 1
          %s141 = smul.addr %s140, 8
          %s142 = scalar_lea.vmem [#allocation5], %s141
          %s143 = smul.u32 2, %s22
          %s145 = ssub.s32 128, 128
          %146 = vsyncadd %s139, %s145
          %s147 = smul.addr %s143, 2
          %s148 = sadd.s32 %s24, %s147
          %s149 = smul.addr %s148, 64
          %s150 = scalar_lea.hbm %s0, %s149
          %s151 = sshll.u32 %s142, 4
          %s152 = int_to_ptr.vmem [resolvable:$true] %s151
          %157 = dma.hbm_to_vmem [thread:$0]  %s150, 128, %s152, %s139, 128, 64, 4
        $region24: #{tpu_custom_call.1} parent=19 // pred_fallthru
          _
      $region20: #{tpu_custom_call.1} parent=5 // pred_fallthru
        _
      %p158 = scmp.le.s32.totalorder 1, %s15
      %p159 = scmp.lt.s32.totalorder %s15, 5
      %p160 = pnand %p158, %p159
      %p161 = pneg %p160
      // Predicated region
      $region25: #{tpu_custom_call.1} parent=5 // pred_check
        _
      $region26: #{tpu_custom_call.1} parent=5 // pred_check_branch
        %163 = sbr.rel (%p160) target = $region28
      $region27: #{tpu_custom_call.1} parent=5 // pred_region
        %s164 = ssub.s32 %s15, 1
        %s165 = sand.u32 %s49, 1
        %s166 = scalar_lea.sflag [#allocation6], %s165
        %s167 = sand.u32 %s49, 1
        %s168 = smul.addr %s167, 8
        %s169 = scalar_lea.vmem [#allocation5], %s168
        // Predicated region
        $region29: #{tpu_custom_call.1} parent=27 // pred_check
          %p170 = pneg %p62
        $region30: #{tpu_custom_call.1} parent=27 // pred_check_branch
          %172 = sbr.rel (%p170) target = $region32
        $region31: #{tpu_custom_call.1} parent=27 // pred_region
          %173 = dma.done %s166, 128
        $region32: #{tpu_custom_call.1} parent=27 // pred_fallthru
          _
        %s174 = sand.u32 %s49, 1
        %s175 = scalar_lea.sflag [#allocation6], %s174
        %s176 = sand.u32 %s49, 1
        %s177 = smul.addr %s176, 8
        %s178 = scalar_lea.vmem [#allocation5], %s177
        %p179 = pneg %p62
        %p180 = pneg %p59
        %p181 = pneg %p83
        %p182 = pneg %p80
        %p183 = pneg %p113
        %p184 = pneg %p110
        %s185 = sand.u32 %s100, 1
        %s186 = scalar_lea.sflag [#allocation7], %s185
        %s187 = sand.u32 %s100, 1
        %s188 = smul.addr %s187, 8
        %s189 = scalar_lea.vmem [#allocation8], %s188
        %s190 = smul.u32 2, %s25
        %s191 = smul.u32 %s26, %s27
        %s192 = smul.u32 2, %s25
        %p193 = scmp.eq.s32.totalorder %s26, 0
        %p194 = scmp.eq.s32.totalorder %s27, 0
        %p195 = pnand %p193, %p194
        %p196 = pneg %p195
        // Predicated region
        $region33: #{tpu_custom_call.1} parent=27 // pred_check
          _
        $region34: #{tpu_custom_call.1} parent=27 // pred_check_branch
          %198 = sbr.rel (%p195) target = $region36
        $region35: #{tpu_custom_call.1} parent=27 // pred_region
          %vm199 = vcmask 27648
          %200 = vst.msk [vmem:[#allocation2] sm:$0xf] %vm199, 0.0
          %201 = vst.msk [vmem:[#allocation2 + $0x4] sm:$0xf] %vm199, 0.0
        $region36: #{tpu_custom_call.1} parent=27 // pred_fallthru
          _
        // Predicated region
        $region37: #{tpu_custom_call.1} parent=27 // pred_check
          %p202 = pneg %p193
        $region38: #{tpu_custom_call.1} parent=27 // pred_check_branch
          %204 = sbr.rel (%p202) target = $region40
        $region39: #{tpu_custom_call.1} parent=27 // pred_region
          %v205 = vld [vmem:[%s169] sm:$0xf]
          %v206 = vld [vmem:[%s169 + $0x4] sm:$0xf]
          %v207 = vld [vmem:[#allocation2] sm:$0xf]
          %v208 = vld [vmem:[#allocation2 + $0x4] sm:$0xf]
          %209 = vmatprep.subr.mxu0 0.0
          %210 = vmatpush1.xpose.msra.mxu0 0.0
          %211 = vmatprep.subr.mxu0 0.0
          %212 = vmatpush1.xpose.msra.mxu0 0.0
          %213 = vmatprep.subr.mxu0 0.0
          %214 = vmatpush1.xpose.msra.mxu0 0.0
          %215 = vmatprep.subr.mxu0 0.0
          %216 = vmatpush1.xpose.msra.mxu0 0.0
          %217 = vmatprep.subr.mxu0 0.0
          %218 = vmatpush1.xpose.msra.mxu0 0.0
          %219 = vmatprep.subr.mxu0 0.0
          %220 = vmatpush1.xpose.msra.mxu0 0.0
          %221 = vmatprep.subr.mxu0 0.0
          %222 = vmatpush1.xpose.msra.mxu0 0.0
          %223 = vmatprep.subr.mxu0 0.0
          %224 = vmatpush1.xpose.msra.mxu0 0.0
          %225 = vmatprep.subr.mxu0 0.0
          %226 = vmatpush1.xpose.msra.mxu0 0.0
          %227 = vmatprep.subr.mxu0 0.0
          %228 = vmatpush1.xpose.msra.mxu0 0.0
          %229 = vmatprep.subr.mxu0 0.0
          %230 = vmatpush1.xpose.msra.mxu0 0.0
          %231 = vmatprep.subr.mxu0 0.0
          %232 = vmatpush1.xpose.msra.mxu0 0.0
          %233 = vmatprep.subr.mxu0 0.0
          %234 = vmatpush1.xpose.msra.mxu0 0.0
          %235 = vmatprep.subr.mxu0 0.0
          %236 = vmatpush1.xpose.msra.mxu0 0.0
          %237 = vmatprep.subr.mxu0 0.0
          %238 = vmatpush1.xpose.msra.mxu0 0.0
          %239 = vmatprep.subr.mxu0 0.0
          %240 = vmatpush1.xpose.msra.mxu0 %v205
          %241 = vmatprep.subr.mxu0 0.0
          %242 = vmatpush2.xpose.msra.mxu0 0.0
          %243 = vmatprep.subr.mxu0 0.0
          %244 = vmatpush2.xpose.msra.mxu0 0.0
          %245 = vmatprep.subr.mxu0 0.0
          %246 = vmatpush2.xpose.msra.mxu0 0.0
          %247 = vmatprep.subr.mxu0 0.0
          %248 = vmatpush2.xpose.msra.mxu0 0.0
          %249 = vmatprep.subr.mxu0 0.0
          %250 = vmatpush2.xpose.msra.mxu0 0.0
          %251 = vmatprep.subr.mxu0 0.0
          %252 = vmatpush2.xpose.msra.mxu0 0.0
          %253 = vmatprep.subr.mxu0 0.0
          %254 = vmatpush2.xpose.msra.mxu0 0.0
          %255 = vmatprep.subr.mxu0 0.0
          %256 = vmatpush2.xpose.msra.mxu0 0.0
          %257 = vmatprep.subr.mxu0 0.0
          %258 = vmatpush2.xpose.msra.mxu0 0.0
          %259 = vmatprep.subr.mxu0 0.0
          %260 = vmatpush2.xpose.msra.mxu0 0.0
          %261 = vmatprep.subr.mxu0 0.0
          %262 = vmatpush2.xpose.msra.mxu0 0.0
          %263 = vmatprep.subr.mxu0 0.0
          %264 = vmatpush2.xpose.msra.mxu0 0.0
          %265 = vmatprep.subr.mxu0 0.0
          %266 = vmatpush2.xpose.msra.mxu0 0.0
          %267 = vmatprep.subr.mxu0 0.0
          %268 = vmatpush2.xpose.msra.mxu0 0.0
          %269 = vmatprep.subr.mxu0 0.0
          %270 = vmatpush2.xpose.msra.mxu0 0.0
          %271 = vmatprep.subr.mxu0 0.0
          %272 = vmatpush2.xpose.msra.mxu0 0.0
          %273 = vmatprep.mubr.f32.mxu0 0.0
          %274 = vmatmul.mubr.f32.gmra.mxu0 %v205
          %v275 = vpop.f32.mrf.mxu0
          %v276 = vadd.f32 0.0, %v275
          %v277 = vpop.f32.mrf.mxu0
          %278 = vdwg.mxu0
          %279 = vmatprep.subr.mxu0 0.0
          %280 = vmatpush1.xpose.msra.mxu0 0.0
          %281 = vmatprep.subr.mxu0 0.0
          %282 = vmatpush1.xpose.msra.mxu0 0.0
          %283 = vmatprep.subr.mxu0 0.0
          %284 = vmatpush1.xpose.msra.mxu0 0.0
          %285 = vmatprep.subr.mxu0 0.0
          %286 = vmatpush1.xpose.msra.mxu0 0.0
          %287 = vmatprep.subr.mxu0 0.0
          %288 = vmatpush1.xpose.msra.mxu0 0.0
          %289 = vmatprep.subr.mxu0 0.0
          %290 = vmatpush1.xpose.msra.mxu0 0.0
          %291 = vmatprep.subr.mxu0 0.0
          %292 = vmatpush1.xpose.msra.mxu0 0.0
          %293 = vmatprep.subr.mxu0 0.0
          %294 = vmatpush1.xpose.msra.mxu0 0.0
          %295 = vmatprep.subr.mxu0 0.0
          %296 = vmatpush1.xpose.msra.mxu0 0.0
          %297 = vmatprep.subr.mxu0 0.0
          %298 = vmatpush1.xpose.msra.mxu0 0.0
          %299 = vmatprep.subr.mxu0 0.0
          %300 = vmatpush1.xpose.msra.mxu0 0.0
          %301 = vmatprep.subr.mxu0 0.0
          %302 = vmatpush1.xpose.msra.mxu0 0.0
          %303 = vmatprep.subr.mxu0 0.0
          %304 = vmatpush1.xpose.msra.mxu0 0.0
          %305 = vmatprep.subr.mxu0 0.0
          %306 = vmatpush1.xpose.msra.mxu0 0.0
          %307 = vmatprep.subr.mxu0 0.0
          %308 = vmatpush1.xpose.msra.mxu0 0.0
          %309 = vmatprep.subr.mxu0 0.0
          %310 = vmatpush1.xpose.msra.mxu0 %v206
          %311 = vmatprep.subr.mxu0 0.0
          %312 = vmatpush2.xpose.msra.mxu0 0.0
          %313 = vmatprep.subr.mxu0 0.0
          %314 = vmatpush2.xpose.msra.mxu0 0.0
          %315 = vmatprep.subr.mxu0 0.0
          %316 = vmatpush2.xpose.msra.mxu0 0.0
          %317 = vmatprep.subr.mxu0 0.0
          %318 = vmatpush2.xpose.msra.mxu0 0.0
          %319 = vmatprep.subr.mxu0 0.0
          %320 = vmatpush2.xpose.msra.mxu0 0.0
          %321 = vmatprep.subr.mxu0 0.0
          %322 = vmatpush2.xpose.msra.mxu0 0.0
          %323 = vmatprep.subr.mxu0 0.0
          %324 = vmatpush2.xpose.msra.mxu0 0.0
          %325 = vmatprep.subr.mxu0 0.0
          %326 = vmatpush2.xpose.msra.mxu0 0.0
          %327 = vmatprep.subr.mxu0 0.0
          %328 = vmatpush2.xpose.msra.mxu0 0.0
          %329 = vmatprep.subr.mxu0 0.0
          %330 = vmatpush2.xpose.msra.mxu0 0.0
          %331 = vmatprep.subr.mxu0 0.0
          %332 = vmatpush2.xpose.msra.mxu0 0.0
          %333 = vmatprep.subr.mxu0 0.0
          %334 = vmatpush2.xpose.msra.mxu0 0.0
          %335 = vmatprep.subr.mxu0 0.0
          %336 = vmatpush2.xpose.msra.mxu0 0.0
          %337 = vmatprep.subr.mxu0 0.0
          %338 = vmatpush2.xpose.msra.mxu0 0.0
          %339 = vmatprep.subr.mxu0 0.0
          %340 = vmatpush2.xpose.msra.mxu0 0.0
          %341 = vmatprep.subr.mxu0 0.0
          %342 = vmatpush2.xpose.msra.mxu0 0.0
          %343 = vmatprep.mubr.f32.mxu0 0.0
          %344 = vmatmul.mubr.f32.gmra.mxu0 %v206
          %v345 = vpop.f32.mrf.mxu0
          %v346 = vadd.f32 0.0, %v345
          %v347 = vpop.f32.mrf.mxu0
          %348 = vdwg.mxu0
          %v349 = vadd.f32 %v207, %v276
          %v350 = vadd.f32 %v208, %v346
          %vm351 = vcmask 27648
          %352 = vst.msk [vmem:[#allocation2] sm:$0xf] %vm351, %v349
          %353 = vst.msk [vmem:[#allocation2 + $0x4] sm:$0xf] %vm351, %v350
        $region40: #{tpu_custom_call.1} parent=27 // pred_fallthru
          _
        %p354 = scmp.eq.s32.totalorder %s27, 1
        %p355 = pnand %p193, %p354
        %p356 = pneg %p355
        // Predicated region
        $region41: #{tpu_custom_call.1} parent=27 // pred_check
          _
        $region42: #{tpu_custom_call.1} parent=27 // pred_check_branch
          %358 = sbr.rel (%p355) target = $region44
        $region43: #{tpu_custom_call.1} parent=27 // pred_region
          %v359 = vld [vmem:[#allocation2] sm:$0xf]
          %v360 = vld [vmem:[#allocation2 + $0x4] sm:$0xf]
          %vm361 = vcmask 27648
          %v362 = vsel %vm361, %v359, inf
          %363 = vmin.xlane.f32.xlu0 %v362
          %v364 = vpop.xlane.xlu0 %363
          %v365 = vsel %vm361, %v360, inf
          %366 = vmin.xlane.f32.xlu0 %v365
          %v367 = vpop.xlane.xlu0 %366
          %v368 = vsub.f32 %v364, %v359
          %v369 = vsub.f32 %v367, %v360
          %v370 = vmul.f32 %v368, 1.442695
          %v371 = vpow.pop %v370
          %v372 = vmul.f32 %v369, 1.442695
          %v373 = vpow.pop %v372
          %v374 = vsel %vm361, %v371, 0.0
          %375 = vadd.xlane.f32.xlu0 %v374
          %v376 = vpop.xlane.xlu0 %375
          %v377 = vsel %vm361, %v373, 0.0
          %378 = vadd.xlane.f32.xlu0 %v377
          %v379 = vpop.xlane.xlu0 %378
          %s380 = sld [smem:[#allocation4]]
          %v381 = vrcp.pop %v376
          %v382 = vrcp.pop %v379
          %v383 = vstv %s380
          %v384 = vmul.f32 %v383, %v381
          %v385 = vmul.f32 %v383, %v382
          %v386 = vmul.f32 %v371, %v384
          %v387 = vmul.f32 %v373, %v385
          %388 = vst.msk [vmem:[#allocation3] sm:$0xf] %vm361, %v386
          %389 = vst.msk [vmem:[#allocation3 + $0x4] sm:$0xf] %vm361, %v387
        $region44: #{tpu_custom_call.1} parent=27 // pred_fallthru
          _
        %p390 = scmp.eq.s32.totalorder %s26, 1
        // Predicated region
        $region45: #{tpu_custom_call.1} parent=27 // pred_check
          %p391 = pneg %p390
        $region46: #{tpu_custom_call.1} parent=27 // pred_check_branch
          %393 = sbr.rel (%p391) target = $region48
        $region47: #{tpu_custom_call.1} parent=27 // pred_region
          %v394 = vld [vmem:[%s169] sm:$0xf]
          %v395 = vld [vmem:[%s169 + $0x4] sm:$0xf]
          %v396 = vld [vmem:[#allocation3] sm:$0xf]
          %v397 = vld [vmem:[#allocation3 + $0x4] sm:$0xf]
          %vm398 = vcmask 31744
          %v400 = vsel %vm398, %v396, 0
          %vm402 = vcmask 1043456
          %v404 = vsel %vm402, %v394, 0
          %406 = vmatprep.subr.mxu0 0.0
          %407 = vmatpush1.msra.mxu0 0.0
          %408 = vmatprep.subr.mxu0 0.0
          %409 = vmatpush1.msra.mxu0 0.0
          %410 = vmatprep.subr.mxu0 0.0
          %411 = vmatpush1.msra.mxu0 0.0
          %412 = vmatprep.subr.mxu0 0.0
          %413 = vmatpush1.msra.mxu0 0.0
          %414 = vmatprep.subr.mxu0 0.0
          %415 = vmatpush1.msra.mxu0 0.0
          %416 = vmatprep.subr.mxu0 0.0
          %417 = vmatpush1.msra.mxu0 0.0
          %418 = vmatprep.subr.mxu0 0.0
          %419 = vmatpush1.msra.mxu0 0.0
          %420 = vmatprep.subr.mxu0 0.0
          %421 = vmatpush1.msra.mxu0 0.0
          %422 = vmatprep.subr.mxu0 0.0
          %423 = vmatpush1.msra.mxu0 0.0
          %424 = vmatprep.subr.mxu0 0.0
          %425 = vmatpush1.msra.mxu0 0.0
          %426 = vmatprep.subr.mxu0 0.0
          %427 = vmatpush1.msra.mxu0 0.0
          %428 = vmatprep.subr.mxu0 0.0
          %429 = vmatpush1.msra.mxu0 0.0
          %430 = vmatprep.subr.mxu0 0.0
          %431 = vmatpush1.msra.mxu0 0.0
          %432 = vmatprep.subr.mxu0 0.0
          %433 = vmatpush1.msra.mxu0 0.0
          %434 = vmatprep.subr.mxu0 0.0
          %435 = vmatpush1.msra.mxu0 0.0
          %436 = vmatprep.subr.mxu0 0.0
          %437 = vmatpush1.msra.mxu0 %v404
          %438 = vmatprep.subr.mxu0 0.0
          %439 = vmatpush2.msra.mxu0 0.0
          %440 = vmatprep.subr.mxu0 0.0
          %441 = vmatpush2.msra.mxu0 0.0
          %442 = vmatprep.subr.mxu0 0.0
          %443 = vmatpush2.msra.mxu0 0.0
          %444 = vmatprep.subr.mxu0 0.0
          %445 = vmatpush2.msra.mxu0 0.0
          %446 = vmatprep.subr.mxu0 0.0
          %447 = vmatpush2.msra.mxu0 0.0
          %448 = vmatprep.subr.mxu0 0.0
          %449 = vmatpush2.msra.mxu0 0.0
          %450 = vmatprep.subr.mxu0 0.0
          %451 = vmatpush2.msra.mxu0 0.0
          %452 = vmatprep.subr.mxu0 0.0
          %453 = vmatpush2.msra.mxu0 0.0
          %454 = vmatprep.subr.mxu0 0.0
          %455 = vmatpush2.msra.mxu0 0.0
          %456 = vmatprep.subr.mxu0 0.0
          %457 = vmatpush2.msra.mxu0 0.0
          %458 = vmatprep.subr.mxu0 0.0
          %459 = vmatpush2.msra.mxu0 0.0
          %460 = vmatprep.subr.mxu0 0.0
          %461 = vmatpush2.msra.mxu0 0.0
          %462 = vmatprep.subr.mxu0 0.0
          %463 = vmatpush2.msra.mxu0 0.0
          %464 = vmatprep.subr.mxu0 0.0
          %465 = vmatpush2.msra.mxu0 0.0
          %466 = vmatprep.subr.mxu0 0.0
          %467 = vmatpush2.msra.mxu0 0.0
          %468 = vmatprep.subr.mxu0 0.0
          %469 = vmatpush2.msra.mxu0 0.0
          %470 = vmatprep.mubr.f32.mxu0 0.0
          %471 = vmatmul.mubr.f32.gmra.mxu0 %v400
          %v472 = vpop.f32.mrf.mxu0
          %v473 = vadd.f32 %v394, %v472
          %v474 = vpop.f32.mrf.mxu0
          %475 = vdwg.mxu0
          %v477 = vsel %vm398, %v397, 0
          %v480 = vsel %vm402, %v395, 0
          %482 = vmatprep.subr.mxu0 0.0
          %483 = vmatpush1.msra.mxu0 0.0
          %484 = vmatprep.subr.mxu0 0.0
          %485 = vmatpush1.msra.mxu0 0.0
          %486 = vmatprep.subr.mxu0 0.0
          %487 = vmatpush1.msra.mxu0 0.0
          %488 = vmatprep.subr.mxu0 0.0
          %489 = vmatpush1.msra.mxu0 0.0
          %490 = vmatprep.subr.mxu0 0.0
          %491 = vmatpush1.msra.mxu0 0.0
          %492 = vmatprep.subr.mxu0 0.0
          %493 = vmatpush1.msra.mxu0 0.0
          %494 = vmatprep.subr.mxu0 0.0
          %495 = vmatpush1.msra.mxu0 0.0
          %496 = vmatprep.subr.mxu0 0.0
          %497 = vmatpush1.msra.mxu0 0.0
          %498 = vmatprep.subr.mxu0 0.0
          %499 = vmatpush1.msra.mxu0 0.0
          %500 = vmatprep.subr.mxu0 0.0
          %501 = vmatpush1.msra.mxu0 0.0
          %502 = vmatprep.subr.mxu0 0.0
          %503 = vmatpush1.msra.mxu0 0.0
          %504 = vmatprep.subr.mxu0 0.0
          %505 = vmatpush1.msra.mxu0 0.0
          %506 = vmatprep.subr.mxu0 0.0
          %507 = vmatpush1.msra.mxu0 0.0
          %508 = vmatprep.subr.mxu0 0.0
          %509 = vmatpush1.msra.mxu0 0.0
          %510 = vmatprep.subr.mxu0 0.0
          %511 = vmatpush1.msra.mxu0 0.0
          %512 = vmatprep.subr.mxu0 0.0
          %513 = vmatpush1.msra.mxu0 %v480
          %514 = vmatprep.subr.mxu0 0.0
          %515 = vmatpush2.msra.mxu0 0.0
          %516 = vmatprep.subr.mxu0 0.0
          %517 = vmatpush2.msra.mxu0 0.0
          %518 = vmatprep.subr.mxu0 0.0
          %519 = vmatpush2.msra.mxu0 0.0
          %520 = vmatprep.subr.mxu0 0.0
          %521 = vmatpush2.msra.mxu0 0.0
          %522 = vmatprep.subr.mxu0 0.0
          %523 = vmatpush2.msra.mxu0 0.0
          %524 = vmatprep.subr.mxu0 0.0
          %525 = vmatpush2.msra.mxu0 0.0
          %526 = vmatprep.subr.mxu0 0.0
          %527 = vmatpush2.msra.mxu0 0.0
          %528 = vmatprep.subr.mxu0 0.0
          %529 = vmatpush2.msra.mxu0 0.0
          %530 = vmatprep.subr.mxu0 0.0
          %531 = vmatpush2.msra.mxu0 0.0
          %532 = vmatprep.subr.mxu0 0.0
          %533 = vmatpush2.msra.mxu0 0.0
          %534 = vmatprep.subr.mxu0 0.0
          %535 = vmatpush2.msra.mxu0 0.0
          %536 = vmatprep.subr.mxu0 0.0
          %537 = vmatpush2.msra.mxu0 0.0
          %538 = vmatprep.subr.mxu0 0.0
          %539 = vmatpush2.msra.mxu0 0.0
          %540 = vmatprep.subr.mxu0 0.0
          %541 = vmatpush2.msra.mxu0 0.0
          %542 = vmatprep.subr.mxu0 0.0
          %543 = vmatpush2.msra.mxu0 0.0
          %544 = vmatprep.subr.mxu0 0.0
          %545 = vmatpush2.msra.mxu0 0.0
          %546 = vmatprep.mubr.f32.mxu0 0.0
          %547 = vmatmul.mubr.f32.gmra.mxu0 %v477
          %v548 = vpop.f32.mrf.mxu0
          %v549 = vadd.f32 %v395, %v548
          %v550 = vpop.f32.mrf.mxu0
          %551 = vdwg.mxu0
          %552 = vst [vmem:[%s189] sm:$0xf] %v473
          %553 = vst [vmem:[%s189 + $0x4] sm:$0xf] %v549
        $region48: #{tpu_custom_call.1} parent=27 // pred_fallthru
          _
        %s554 = sand.u32 %s100, 1
        %s555 = scalar_lea.sflag [#allocation7], %s554
        %s556 = sand.u32 %s100, 1
        %s557 = smul.addr %s556, 8
        %s558 = scalar_lea.vmem [#allocation8], %s557
        // Predicated region
        $region49: #{tpu_custom_call.1} parent=27 // pred_check
          %p559 = pneg %p110
        $region50: #{tpu_custom_call.1} parent=27 // pred_check_branch
          %561 = sbr.rel (%p559) target = $region52
        $region51: #{tpu_custom_call.1} parent=27 // pred_region
          %s562 = smul.u32 %s26, %s27
          %s563 = smul.u32 2, %s25
          %s565 = ssub.s32 128, 128
          %566 = vsyncadd %s555, %s565
          %s567 = smul.addr %s563, 2
          %s568 = sadd.s32 %s562, %s567
          %s569 = smul.addr %s568, 64
          %s570 = scalar_lea.hbm %s2, %s569
          %s571 = sshll.u32 %s558, 4
          %s572 = int_to_ptr.vmem [resolvable:$true] %s571
          %577 = dma.vmem_to_hbm [thread:$0]  %s572, 128, %s570, %s555, 64, 128, 4
        $region52: #{tpu_custom_call.1} parent=27 // pred_fallthru
          _
      $region28: #{tpu_custom_call.1} parent=5 // pred_fallthru
        _
      %p578 = scmp.le.s32.totalorder 2, %s15
      // Predicated region
      $region53: #{tpu_custom_call.1} parent=5 // pred_check
        %p579 = pneg %p578
      $region54: #{tpu_custom_call.1} parent=5 // pred_check_branch
        %581 = sbr.rel (%p579) target = $region56
      $region55: #{tpu_custom_call.1} parent=5 // pred_region
        %s582 = ssub.s32 %s15, 2
        // Predicated region
        $region57: #{tpu_custom_call.1} parent=55 // pred_check
          %p583 = pneg %p116
        $region58: #{tpu_custom_call.1} parent=55 // pred_check_branch
          %585 = sbr.rel (%p583) target = $region60
        $region59: #{tpu_custom_call.1} parent=55 // pred_region
          %s586 = sand.u32 %s101, 1
          %s587 = scalar_lea.sflag [#allocation7], %s586
          %s588 = sand.u32 %s101, 1
          %s589 = smul.addr %s588, 8
          %s590 = scalar_lea.vmem [#allocation8], %s589
          %591 = dma.done %s587, 128
        $region60: #{tpu_custom_call.1} parent=55 // pred_fallthru
          _
      $region56: #{tpu_custom_call.1} parent=5 // pred_fallthru
        _
    $region6: #{tpu_custom_call.1} parent=1 // loop_footer
      %s19 = sadd.s32 1, %s15
    $region7: #{tpu_custom_call.1} parent=1 // loop_footer_branch
      %14 = sbr.rel target = $region3
    $region8: #{tpu_custom_call.1} parent=1 // loop_exit
      _
    %592 = vsyncpa [#allocation6], 1
    %s593 = scalar_lea.sflag [#allocation6], 1
    %594 = vsyncpa %s593, 1
    %595 = vsyncpa [#allocation7], 1
    %s596 = scalar_lea.sflag [#allocation7], 1
    %597 = vsyncpa %s596, 1

</llo_original>
